<compile_context>
chip_gen: v7x
topology: tpu7x:2x2x1
jax: 0.10.0
libtpu: 0.0.40
codegen_flags: <defaults>
</compile_context>

<pallas_src>
import functools

import jax
import jax.numpy as jnp
from jax import lax
from jax.experimental import pallas as pl
from jax.experimental.pallas import tpu as pltpu


def _color_kernel(x_ref, w_ref, b_ref, a_ref, o_ref, *,
                  H, W, C, K, pad, stride, Ho, Wo):
    """Conv3x3 (one banded matmul) + bias + PReLU + MaxPool(3, s=2, p=1).

    x_ref : (NB, H, W*C)          unpadded lane-dense activations (bf16/f32)
    w_ref : (K*(W+2p)*C, W*C)     banded conv weight, rows (kh, wi, ci), cols (wo, co)
    b_ref : (1, W*C)              bias tiled along W          (f32)
    a_ref : (1, W*C)              PReLU slope tiled along W   (f32)
    o_ref : (NB, Ho, Wo*C)        pooled lane-dense output    (f32)
    """
    NB = x_ref.shape[0]
    Wp = W + 2 * pad
    cdt = x_ref.dtype
    NEG = jnp.float32(-jnp.inf)

    # ---- fused zero-pad + row-shift "im2row": one lane-dense LHS for the block ----
    zc = jnp.zeros((H, pad * C), cdt)
    zr = jnp.zeros((pad, Wp * C), cdt)
    lhs_rows = []
    for n in range(NB):
        xp = jnp.concatenate(
            [zr, jnp.concatenate([zc, x_ref[n], zc], axis=1), zr], axis=0)       # (H+2p, Wp*C)
        lhs_rows.append(
            jnp.concatenate([xp[kh:kh + H, :] for kh in range(K)], axis=1))      # (H, K*Wp*C)
    lhs = jnp.concatenate(lhs_rows, axis=0) if NB > 1 else lhs_rows[0]           # (NB*H, K*Wp*C)

    # ---- conv: single MXU matmul, f32 accumulate ----
    y = jnp.dot(lhs, w_ref[...], preferred_element_type=jnp.float32)             # (NB*H, W*C)

    # ---- bias + PReLU (f32 VPU) ----
    y = y + b_ref[...]
    y = jnp.where(y > 0, y, a_ref[...] * y)

    # ---- MaxPool2d(K, stride, pad) with implicit -inf padding (separable shifted maxima) ----
    negc = jnp.full((H, pad * C), NEG, jnp.float32)
    negr = jnp.full((pad, Wo * C), NEG, jnp.float32)
    for n in range(NB):
        yn = y[n * H:(n + 1) * H, :]                                             # (H, W*C)

        # W direction: window-K max via K lane-shifted views, then stride subsample.
        yp = jnp.concatenate([negc, yn, negc], axis=1)                           # (H, (W+2p)*C)
        mw = yp[:, 0:W * C]
        for kw in range(1, K):
            mw = jnp.maximum(mw, yp[:, kw * C:kw * C + W * C])
        mw = jnp.concatenate(
            [mw[:, (stride * j) * C:(stride * j + 1) * C] for j in range(Wo)],
            axis=1)                                                              # (H, Wo*C)

        # H direction: window-K max via K sublane-shifted views, then stride subsample.
        mp = jnp.concatenate([negr, mw, negr], axis=0)                           # (H+2p, Wo*C)
        mh = mp[0:H, :]
        for kh in range(1, K):
            mh = jnp.maximum(mh, mp[kh:kh + H, :])
        out = jnp.concatenate(
            [mh[stride * i:stride * i + 1, :] for i in range(Ho)], axis=0)       # (Ho, Wo*C)

        o_ref[n] = out.astype(o_ref.dtype)


def _tensorcores_per_chip():
    """2 on v7x-class chips (keep a batch-parallel grid), else 1 (collapse grid)."""
    try:
        kind = jax.devices()[0].device_kind.lower()
    except Exception:
        return 1
    return 2 if ("v7" in kind or "7x" in kind) else 1


def color_function(x_nchw, w_hwio, bias, prelu_slope, *,
                   kernel_size=3, padding=1, pool_stride=2,
                   matmul_dtype=jnp.bfloat16):
    """Pallas equivalent of Color_Function.forward. Input/output are NCHW."""
    N, C, H, W = x_nchw.shape
    K, pad = kernel_size, padding
    assert pad == (K - 1) // 2, "conv must preserve H, W (same padding)"
    Wp = W + 2 * pad
    Ho = (H + 2 * pad - K) // pool_stride + 1
    Wo = (W + 2 * pad - K) // pool_stride + 1

    # glue: NCHW -> lane-dense (N, H, W*C). Zero padding happens inside the kernel.
    x_lane = jnp.transpose(x_nchw, (0, 2, 3, 1)).reshape(N, H, W * C).astype(matmul_dtype)

    # Banded conv weight: w_big[kh*Wp*C + wi*C + ci, wo*C + co] = w[kh, wi-wo, ci, co]
    # (zero outside the band), so one matmul implements the whole KxK conv along W.
    wi = jnp.arange(Wp)[None, :, None]
    wo = jnp.arange(W)[None, None, :]
    kw = jnp.arange(K)[:, None, None]
    sel = (wi == wo + kw).astype(jnp.float32)                                    # (K, Wp, W)
    w_band = jnp.einsum("kiw,hkcd->hicwd", sel, w_hwio.astype(jnp.float32))      # (K,Wp,C,W,C)
    w_big = w_band.reshape(K * Wp * C, W * C).astype(matmul_dtype)

    b_row = jnp.tile(jnp.asarray(bias, jnp.float32).reshape(1, C), (1, W))       # (1, W*C)
    a_vec = jnp.broadcast_to(jnp.asarray(prelu_slope, jnp.float32).reshape(-1), (C,))
    a_row = jnp.tile(a_vec.reshape(1, C), (1, W))                                # (1, W*C)

    # Grid: whole batch in one step on single-TC chips; batch-parallel on v7x.
    nb = 1 if (_tensorcores_per_chip() > 1 and N > 1) else N
    grid = (N // nb,)

    kernel = functools.partial(
        _color_kernel, H=H, W=W, C=C, K=K, pad=pad, stride=pool_stride, Ho=Ho, Wo=Wo)

    out_flat = pl.pallas_call(
        kernel,
        out_shape=jax.ShapeDtypeStruct((N, Ho, Wo * C), jnp.float32),
        grid_spec=pltpu.PrefetchScalarGridSpec(
            num_scalar_prefetch=0,
            grid=grid,
            in_specs=[
                pl.BlockSpec((nb, H, W * C), lambda n: (n, 0, 0)),
                pl.BlockSpec((K * Wp * C, W * C), lambda n: (0, 0)),
                pl.BlockSpec((1, W * C), lambda n: (0, 0)),
                pl.BlockSpec((1, W * C), lambda n: (0, 0)),
            ],
            out_specs=pl.BlockSpec((nb, Ho, Wo * C), lambda n: (n, 0, 0)),
        ),
        compiler_params=pltpu.CompilerParams(dimension_semantics=("parallel",)),
    )(x_lane, w_big, b_row, a_row)

    # glue: lane-dense (N, Ho, Wo*C) -> NCHW.  (Downstream consumers that accept the
    # lane-dense layout could skip this transpose entirely.)
    return jnp.transpose(out_flat.reshape(N, Ho, Wo, C), (0, 3, 1, 2))


def _reference(x_nchw, w_hwio, bias, prelu_slope):
    """Pure-JAX/XLA f32 reference for the same math."""
    x_nhwc = jnp.transpose(x_nchw, (0, 2, 3, 1))
    conv = lax.conv_general_dilated(
        x_nhwc, w_hwio, window_strides=(1, 1), padding=[(1, 1), (1, 1)],
        dimension_numbers=("NHWC", "HWIO", "NHWC"),
    ) + bias.reshape(1, 1, 1, -1)
    act = jnp.where(conv > 0, conv, prelu_slope.reshape(1, 1, 1, -1) * conv)
    pooled = lax.reduce_window(
        act, -jnp.inf, lax.max,
        window_dimensions=(1, 3, 3, 1), window_strides=(1, 2, 2, 1),
        padding=[(0, 0), (1, 1), (1, 1), (0, 0)],
    )
    return jnp.transpose(pooled, (0, 3, 1, 2))


if __name__ == "__main__":
    # Module hyper-params: n_feats = 8, kernel_size = 3, padding = 1.
    N, C, H, W = 2, 8, 16, 16
    K = 3

    key = jax.random.PRNGKey(0)
    kx, kwt, kb = jax.random.split(key, 3)

    x = jax.random.normal(kx, (N, C, H, W), jnp.float32)
    # Conv2d(C->C, 3x3, bias=True); PReLU slope (scalar 0.25 replicated per channel).
    w_hwio = 0.05 * jax.random.normal(kwt, (K, K, C, C), jnp.float32)   # HWIO
    bias = 0.1 * jax.random.normal(kb, (C,), jnp.float32)
    prelu_slope = jnp.full((C,), 0.25, jnp.float32)

    out = color_function(x, w_hwio, bias, prelu_slope)
    out = jax.block_until_ready(out)

    ref = _reference(x, w_hwio, bias, prelu_slope)

    assert out.shape == (N, C, H // 2, W // 2), out.shape
    err = float(jnp.max(jnp.abs(out - ref)))
    assert jnp.allclose(out, ref, atol=2e-2, rtol=2e-2), err

    print("KERNEL_OK")
</pallas_src>

<mosaic_0001>
module attributes {stable_mosaic.version = 11 : i64} {
  func.func @_color_kernel(%arg0: i32, %arg1: memref<2x16x128xbf16, #tpu.memory_space<vmem>>, %arg2: memref<432x128xbf16, #tpu.memory_space<vmem>>, %arg3: memref<1x128xf32, #tpu.memory_space<vmem>>, %arg4: memref<1x128xf32, #tpu.memory_space<vmem>>, %arg5: memref<2x8x64xf32, #tpu.memory_space<vmem>>) attributes {dimension_semantics = [#tpu.dimension_semantics<parallel>], iteration_bounds = array<i64: 1>, scalar_prefetch = 0 : i64, scratch_operands = 0 : i64, tpu.core_type = #tpu.core_type<tc>, window_params = [{transform_indices = @transform_0, window_bounds = array<i64: 2, 16, 128>}, {pipeline_mode = #tpu.pipeline_mode<synchronous>, transform_indices = @transform_1, window_bounds = array<i64: 432, 128>}, {pipeline_mode = #tpu.pipeline_mode<synchronous>, transform_indices = @transform_2, window_bounds = array<i64: 1, 128>}, {pipeline_mode = #tpu.pipeline_mode<synchronous>, transform_indices = @transform_3, window_bounds = array<i64: 1, 128>}, {transform_indices = @transform_4, window_bounds = array<i64: 2, 8, 64>}]} {
    %cst = arith.constant 0.000000e+00 : bf16
    %0 = vector.broadcast %cst : bf16 to vector<16x8xbf16>
    %cst_0 = arith.constant 0.000000e+00 : bf16
    %1 = vector.broadcast %cst_0 : bf16 to vector<1x144xbf16>
    %c0 = arith.constant 0 : index
    %c0_1 = arith.constant 0 : index
    %c0_2 = arith.constant 0 : index
    %2 = vector.load %arg1[%c0, %c0_1, %c0_2] : memref<2x16x128xbf16, #tpu.memory_space<vmem>>, vector<1x16x128xbf16>
    %3 = vector.shape_cast %2 : vector<1x16x128xbf16> to vector<16x128xbf16>
    %4 = tpu.concatenate %0, %3, %0 in 1 : vector<16x8xbf16>, vector<16x128xbf16>, vector<16x8xbf16> -> vector<16x144xbf16>
    %5 = tpu.concatenate %1, %4, %1 in 0 : vector<1x144xbf16>, vector<16x144xbf16>, vector<1x144xbf16> -> vector<18x144xbf16>
    %6 = vector.extract_strided_slice %5 {offsets = [0, 0], sizes = [16, 144], strides = [1, 1]} : vector<18x144xbf16> to vector<16x144xbf16>
    %7 = vector.extract_strided_slice %5 {offsets = [1, 0], sizes = [16, 144], strides = [1, 1]} : vector<18x144xbf16> to vector<16x144xbf16>
    %8 = vector.extract_strided_slice %5 {offsets = [2, 0], sizes = [16, 144], strides = [1, 1]} : vector<18x144xbf16> to vector<16x144xbf16>
    %9 = tpu.concatenate %6, %7, %8 in 1 : vector<16x144xbf16>, vector<16x144xbf16>, vector<16x144xbf16> -> vector<16x432xbf16>
    %c1 = arith.constant 1 : index
    %c0_3 = arith.constant 0 : index
    %c0_4 = arith.constant 0 : index
    %10 = vector.load %arg1[%c1, %c0_3, %c0_4] : memref<2x16x128xbf16, #tpu.memory_space<vmem>>, vector<1x16x128xbf16>
    %11 = vector.shape_cast %10 : vector<1x16x128xbf16> to vector<16x128xbf16>
    %12 = tpu.concatenate %0, %11, %0 in 1 : vector<16x8xbf16>, vector<16x128xbf16>, vector<16x8xbf16> -> vector<16x144xbf16>
    %13 = tpu.concatenate %1, %12, %1 in 0 : vector<1x144xbf16>, vector<16x144xbf16>, vector<1x144xbf16> -> vector<18x144xbf16>
    %14 = vector.extract_strided_slice %13 {offsets = [0, 0], sizes = [16, 144], strides = [1, 1]} : vector<18x144xbf16> to vector<16x144xbf16>
    %15 = vector.extract_strided_slice %13 {offsets = [1, 0], sizes = [16, 144], strides = [1, 1]} : vector<18x144xbf16> to vector<16x144xbf16>
    %16 = vector.extract_strided_slice %13 {offsets = [2, 0], sizes = [16, 144], strides = [1, 1]} : vector<18x144xbf16> to vector<16x144xbf16>
    %17 = tpu.concatenate %14, %15, %16 in 1 : vector<16x144xbf16>, vector<16x144xbf16>, vector<16x144xbf16> -> vector<16x432xbf16>
    %18 = tpu.concatenate %9, %17 in 0 : vector<16x432xbf16>, vector<16x432xbf16> -> vector<32x432xbf16>
    %c0_5 = arith.constant 0 : index
    %c0_6 = arith.constant 0 : index
    %19 = vector.load %arg2[%c0_5, %c0_6] : memref<432x128xbf16, #tpu.memory_space<vmem>>, vector<432x128xbf16>
    %cst_7 = arith.constant dense<0.000000e+00> : vector<32x128xf32>
    %20 = tpu.matmul %18, %19, %cst_7 {dimension_numbers = #tpu.dot_dimension_numbers<[1], [0], [0], [1], [0, 0, 1, 1], [], []>} : vector<32x432xbf16>, vector<432x128xbf16>, vector<32x128xf32> -> vector<32x128xf32>
    %c0_8 = arith.constant 0 : index
    %c0_9 = arith.constant 0 : index
    %21 = vector.load %arg3[%c0_8, %c0_9] : memref<1x128xf32, #tpu.memory_space<vmem>>, vector<1x128xf32>
    %22 = vector.broadcast %21 : vector<1x128xf32> to vector<32x128xf32>
    %23 = arith.addf %20, %22 : vector<32x128xf32>
    %cst_10 = arith.constant 0.000000e+00 : f32
    %24 = vector.broadcast %cst_10 : f32 to vector<32x128xf32>
    %25 = arith.cmpf ogt, %23, %24 : vector<32x128xf32>
    %c0_11 = arith.constant 0 : index
    %c0_12 = arith.constant 0 : index
    %26 = vector.load %arg4[%c0_11, %c0_12] : memref<1x128xf32, #tpu.memory_space<vmem>>, vector<1x128xf32>
    %27 = vector.broadcast %26 : vector<1x128xf32> to vector<32x128xf32>
    %28 = arith.mulf %27, %23 : vector<32x128xf32>
    %29 = arith.select %25, %23, %28 : vector<32x128xi1>, vector<32x128xf32>
    %cst_13 = arith.constant 0xFF800000 : f32
    %30 = vector.broadcast %cst_13 : f32 to vector<16x8xf32>
    %cst_14 = arith.constant 0xFF800000 : f32
    %31 = vector.broadcast %cst_14 : f32 to vector<1x64xf32>
    %32 = vector.extract_strided_slice %29 {offsets = [0, 0], sizes = [16, 128], strides = [1, 1]} : vector<32x128xf32> to vector<16x128xf32>
    %33 = tpu.concatenate %30, %32, %30 in 1 : vector<16x8xf32>, vector<16x128xf32>, vector<16x8xf32> -> vector<16x144xf32>
    %34 = vector.extract_strided_slice %33 {offsets = [0, 0], sizes = [16, 128], strides = [1, 1]} : vector<16x144xf32> to vector<16x128xf32>
    %35 = vector.extract_strided_slice %33 {offsets = [0, 8], sizes = [16, 128], strides = [1, 1]} : vector<16x144xf32> to vector<16x128xf32>
    %36 = arith.maximumf %34, %35 : vector<16x128xf32>
    %37 = vector.extract_strided_slice %33 {offsets = [0, 16], sizes = [16, 128], strides = [1, 1]} : vector<16x144xf32> to vector<16x128xf32>
    %38 = arith.maximumf %36, %37 : vector<16x128xf32>
    %39 = vector.extract_strided_slice %38 {offsets = [0, 0], sizes = [16, 8], strides = [1, 1]} : vector<16x128xf32> to vector<16x8xf32>
    %40 = vector.extract_strided_slice %38 {offsets = [0, 16], sizes = [16, 8], strides = [1, 1]} : vector<16x128xf32> to vector<16x8xf32>
    %41 = vector.extract_strided_slice %38 {offsets = [0, 32], sizes = [16, 8], strides = [1, 1]} : vector<16x128xf32> to vector<16x8xf32>
    %42 = vector.extract_strided_slice %38 {offsets = [0, 48], sizes = [16, 8], strides = [1, 1]} : vector<16x128xf32> to vector<16x8xf32>
    %43 = vector.extract_strided_slice %38 {offsets = [0, 64], sizes = [16, 8], strides = [1, 1]} : vector<16x128xf32> to vector<16x8xf32>
    %44 = vector.extract_strided_slice %38 {offsets = [0, 80], sizes = [16, 8], strides = [1, 1]} : vector<16x128xf32> to vector<16x8xf32>
    %45 = vector.extract_strided_slice %38 {offsets = [0, 96], sizes = [16, 8], strides = [1, 1]} : vector<16x128xf32> to vector<16x8xf32>
    %46 = vector.extract_strided_slice %38 {offsets = [0, 112], sizes = [16, 8], strides = [1, 1]} : vector<16x128xf32> to vector<16x8xf32>
    %47 = tpu.concatenate %39, %40, %41, %42, %43, %44, %45, %46 in 1 : vector<16x8xf32>, vector<16x8xf32>, vector<16x8xf32>, vector<16x8xf32>, vector<16x8xf32>, vector<16x8xf32>, vector<16x8xf32>, vector<16x8xf32> -> vector<16x64xf32>
    %48 = tpu.concatenate %31, %47, %31 in 0 : vector<1x64xf32>, vector<16x64xf32>, vector<1x64xf32> -> vector<18x64xf32>
    %49 = vector.extract_strided_slice %48 {offsets = [0, 0], sizes = [16, 64], strides = [1, 1]} : vector<18x64xf32> to vector<16x64xf32>
    %50 = vector.extract_strided_slice %48 {offsets = [1, 0], sizes = [16, 64], strides = [1, 1]} : vector<18x64xf32> to vector<16x64xf32>
    %51 = arith.maximumf %49, %50 : vector<16x64xf32>
    %52 = vector.extract_strided_slice %48 {offsets = [2, 0], sizes = [16, 64], strides = [1, 1]} : vector<18x64xf32> to vector<16x64xf32>
    %53 = arith.maximumf %51, %52 : vector<16x64xf32>
    %54 = vector.extract_strided_slice %53 {offsets = [0, 0], sizes = [1, 64], strides = [1, 1]} : vector<16x64xf32> to vector<1x64xf32>
    %55 = vector.extract_strided_slice %53 {offsets = [2, 0], sizes = [1, 64], strides = [1, 1]} : vector<16x64xf32> to vector<1x64xf32>
    %56 = vector.extract_strided_slice %53 {offsets = [4, 0], sizes = [1, 64], strides = [1, 1]} : vector<16x64xf32> to vector<1x64xf32>
    %57 = vector.extract_strided_slice %53 {offsets = [6, 0], sizes = [1, 64], strides = [1, 1]} : vector<16x64xf32> to vector<1x64xf32>
    %58 = vector.extract_strided_slice %53 {offsets = [8, 0], sizes = [1, 64], strides = [1, 1]} : vector<16x64xf32> to vector<1x64xf32>
    %59 = vector.extract_strided_slice %53 {offsets = [10, 0], sizes = [1, 64], strides = [1, 1]} : vector<16x64xf32> to vector<1x64xf32>
    %60 = vector.extract_strided_slice %53 {offsets = [12, 0], sizes = [1, 64], strides = [1, 1]} : vector<16x64xf32> to vector<1x64xf32>
    %61 = vector.extract_strided_slice %53 {offsets = [14, 0], sizes = [1, 64], strides = [1, 1]} : vector<16x64xf32> to vector<1x64xf32>
    %62 = tpu.concatenate %54, %55, %56, %57, %58, %59, %60, %61 in 0 : vector<1x64xf32>, vector<1x64xf32>, vector<1x64xf32>, vector<1x64xf32>, vector<1x64xf32>, vector<1x64xf32>, vector<1x64xf32>, vector<1x64xf32> -> vector<8x64xf32>
    %c0_15 = arith.constant 0 : index
    %c0_16 = arith.constant 0 : index
    %c0_17 = arith.constant 0 : index
    %63 = vector.load %arg5[%c0_15, %c0_16, %c0_17] : memref<2x8x64xf32, #tpu.memory_space<vmem>>, vector<1x8x64xf32>
    %64 = vector.shape_cast %63 : vector<1x8x64xf32> to vector<8x64xf32>
    %65 = vector.shape_cast %62 : vector<8x64xf32> to vector<1x8x64xf32>
    tpu.vector_store %arg5[%c0_15, %c0_16, %c0_17], %65 {strides = array<i32>} : memref<2x8x64xf32, #tpu.memory_space<vmem>>, vector<1x8x64xf32>,
    %66 = vector.extract_strided_slice %29 {offsets = [16, 0], sizes = [16, 128], strides = [1, 1]} : vector<32x128xf32> to vector<16x128xf32>
    %67 = tpu.concatenate %30, %66, %30 in 1 : vector<16x8xf32>, vector<16x128xf32>, vector<16x8xf32> -> vector<16x144xf32>
    %68 = vector.extract_strided_slice %67 {offsets = [0, 0], sizes = [16, 128], strides = [1, 1]} : vector<16x144xf32> to vector<16x128xf32>
    %69 = vector.extract_strided_slice %67 {offsets = [0, 8], sizes = [16, 128], strides = [1, 1]} : vector<16x144xf32> to vector<16x128xf32>
    %70 = arith.maximumf %68, %69 : vector<16x128xf32>
    %71 = vector.extract_strided_slice %67 {offsets = [0, 16], sizes = [16, 128], strides = [1, 1]} : vector<16x144xf32> to vector<16x128xf32>
    %72 = arith.maximumf %70, %71 : vector<16x128xf32>
    %73 = vector.extract_strided_slice %72 {offsets = [0, 0], sizes = [16, 8], strides = [1, 1]} : vector<16x128xf32> to vector<16x8xf32>
    %74 = vector.extract_strided_slice %72 {offsets = [0, 16], sizes = [16, 8], strides = [1, 1]} : vector<16x128xf32> to vector<16x8xf32>
    %75 = vector.extract_strided_slice %72 {offsets = [0, 32], sizes = [16, 8], strides = [1, 1]} : vector<16x128xf32> to vector<16x8xf32>
    %76 = vector.extract_strided_slice %72 {offsets = [0, 48], sizes = [16, 8], strides = [1, 1]} : vector<16x128xf32> to vector<16x8xf32>
    %77 = vector.extract_strided_slice %72 {offsets = [0, 64], sizes = [16, 8], strides = [1, 1]} : vector<16x128xf32> to vector<16x8xf32>
    %78 = vector.extract_strided_slice %72 {offsets = [0, 80], sizes = [16, 8], strides = [1, 1]} : vector<16x128xf32> to vector<16x8xf32>
    %79 = vector.extract_strided_slice %72 {offsets = [0, 96], sizes = [16, 8], strides = [1, 1]} : vector<16x128xf32> to vector<16x8xf32>
    %80 = vector.extract_strided_slice %72 {offsets = [0, 112], sizes = [16, 8], strides = [1, 1]} : vector<16x128xf32> to vector<16x8xf32>
    %81 = tpu.concatenate %73, %74, %75, %76, %77, %78, %79, %80 in 1 : vector<16x8xf32>, vector<16x8xf32>, vector<16x8xf32>, vector<16x8xf32>, vector<16x8xf32>, vector<16x8xf32>, vector<16x8xf32>, vector<16x8xf32> -> vector<16x64xf32>
    %82 = tpu.concatenate %31, %81, %31 in 0 : vector<1x64xf32>, vector<16x64xf32>, vector<1x64xf32> -> vector<18x64xf32>
    %83 = vector.extract_strided_slice %82 {offsets = [0, 0], sizes = [16, 64], strides = [1, 1]} : vector<18x64xf32> to vector<16x64xf32>
    %84 = vector.extract_strided_slice %82 {offsets = [1, 0], sizes = [16, 64], strides = [1, 1]} : vector<18x64xf32> to vector<16x64xf32>
    %85 = arith.maximumf %83, %84 : vector<16x64xf32>
    %86 = vector.extract_strided_slice %82 {offsets = [2, 0], sizes = [16, 64], strides = [1, 1]} : vector<18x64xf32> to vector<16x64xf32>
    %87 = arith.maximumf %85, %86 : vector<16x64xf32>
    %88 = vector.extract_strided_slice %87 {offsets = [0, 0], sizes = [1, 64], strides = [1, 1]} : vector<16x64xf32> to vector<1x64xf32>
    %89 = vector.extract_strided_slice %87 {offsets = [2, 0], sizes = [1, 64], strides = [1, 1]} : vector<16x64xf32> to vector<1x64xf32>
    %90 = vector.extract_strided_slice %87 {offsets = [4, 0], sizes = [1, 64], strides = [1, 1]} : vector<16x64xf32> to vector<1x64xf32>
    %91 = vector.extract_strided_slice %87 {offsets = [6, 0], sizes = [1, 64], strides = [1, 1]} : vector<16x64xf32> to vector<1x64xf32>
    %92 = vector.extract_strided_slice %87 {offsets = [8, 0], sizes = [1, 64], strides = [1, 1]} : vector<16x64xf32> to vector<1x64xf32>
    %93 = vector.extract_strided_slice %87 {offsets = [10, 0], sizes = [1, 64], strides = [1, 1]} : vector<16x64xf32> to vector<1x64xf32>
    %94 = vector.extract_strided_slice %87 {offsets = [12, 0], sizes = [1, 64], strides = [1, 1]} : vector<16x64xf32> to vector<1x64xf32>
    %95 = vector.extract_strided_slice %87 {offsets = [14, 0], sizes = [1, 64], strides = [1, 1]} : vector<16x64xf32> to vector<1x64xf32>
    %96 = tpu.concatenate %88, %89, %90, %91, %92, %93, %94, %95 in 0 : vector<1x64xf32>, vector<1x64xf32>, vector<1x64xf32>, vector<1x64xf32>, vector<1x64xf32>, vector<1x64xf32>, vector<1x64xf32>, vector<1x64xf32> -> vector<8x64xf32>
    %c1_18 = arith.constant 1 : index
    %c0_19 = arith.constant 0 : index
    %c0_20 = arith.constant 0 : index
    %97 = vector.load %arg5[%c1_18, %c0_19, %c0_20] : memref<2x8x64xf32, #tpu.memory_space<vmem>>, vector<1x8x64xf32>
    %98 = vector.shape_cast %97 : vector<1x8x64xf32> to vector<8x64xf32>
    %99 = vector.shape_cast %96 : vector<8x64xf32> to vector<1x8x64xf32>
    tpu.vector_store %arg5[%c1_18, %c0_19, %c0_20], %99 {strides = array<i32>} : memref<2x8x64xf32, #tpu.memory_space<vmem>>, vector<1x8x64xf32>,
    return
  }
  func.func @transform_0(%arg0: i32) -> (i32, i32, i32) {
    %c0_i32 = arith.constant 0 : i32
    %c0_i32_0 = arith.constant 0 : i32
    %c0_i32_1 = arith.constant 0 : i32
    return %arg0, %c0_i32, %c0_i32_0 : i32, i32, i32
  }
  func.func @transform_1(%arg0: i32) -> (i32, i32) {
    %c0_i32 = arith.constant 0 : i32
    %c0_i32_0 = arith.constant 0 : i32
    %c0_i32_1 = arith.constant 0 : i32
    return %c0_i32, %c0_i32_0 : i32, i32
  }
  func.func @transform_2(%arg0: i32) -> (i32, i32) {
    %c0_i32 = arith.constant 0 : i32
    %c0_i32_0 = arith.constant 0 : i32
    %c0_i32_1 = arith.constant 0 : i32
    return %c0_i32, %c0_i32_0 : i32, i32
  }
  func.func @transform_3(%arg0: i32) -> (i32, i32) {
    %c0_i32 = arith.constant 0 : i32
    %c0_i32_0 = arith.constant 0 : i32
    %c0_i32_1 = arith.constant 0 : i32
    return %c0_i32, %c0_i32_0 : i32, i32
  }
  func.func @transform_4(%arg0: i32) -> (i32, i32, i32) {
    %c0_i32 = arith.constant 0 : i32
    %c0_i32_0 = arith.constant 0 : i32
    %c0_i32_1 = arith.constant 0 : i32
    return %arg0, %c0_i32, %c0_i32_0 : i32, i32, i32
  }
}

</mosaic_0001>

<llo_original>
// kernel: tpu_custom_call.1
$region0: #{tpu_custom_call.1}
  #allocation0 [shape = 'u32[]', space=smem, size = 0x4, offset = 0x4, fixed_abs, tag = 'smem constant byte address 0x4 - core index']
  #allocation1 [shape = 'u32[144,128]{1,0:T(1,128)}', space=vmem, size = 0x12000, scoped, tag = 'internal scratch']
  %s0 = inlined_call_operand.hbm [shape: bf16[2,16,128], index: 0, kind: input, shape index: {}]
  %s1 = inlined_call_operand.hbm [shape: bf16[432,128], index: 1, kind: input, shape index: {}]
  %s2 = inlined_call_operand.vmem [shape: f32[1,128], index: 2, kind: input, shape index: {}]
  %s3 = inlined_call_operand.vmem [shape: f32[1,128], index: 3, kind: input, shape index: {}]
  %s4 = inlined_call_operand.hbm [shape: f32[2,8,64], index: 4, kind: output, shape index: {}]
  %s5 = sld [smem:[#allocation0]]
  $region34: #{tpu_custom_call.1} parent=0
    _
  %s7 = ssub.s32 1, %s5
  %s8 = scalar_select 0, %s7, %s5
  $region1: #{tpu_custom_call.1} parent=0
    #allocation2 [shape = 'u8[8192]{0}', space=vmem, size = 0x2000, scoped, tag = 'input window, operand 0, single buffered']
    #allocation3 [shape = 's32[1]{0}', space=sflag, size = 0x4, scoped, tag = 'scoped memory for tpu_custom_call.1']
    #allocation4 [shape = 's32[1]{0}', space=sflag, size = 0x4, scoped, tag = 'scoped memory for tpu_custom_call.1']
    #allocation5 [shape = 'u8[110592]{0}', space=vmem, size = 0x1b000, scoped, tag = 'input window, operand 1, single buffered']
    #allocation6 [shape = 's32[1]{0}', space=sflag, size = 0x4, scoped, tag = 'scoped memory for tpu_custom_call.1']
    #allocation7 [shape = 'u8[8192]{0}', space=vmem, size = 0x2000, scoped, tag = 'output window, operand 0, single buffered']
    %9 = vsyncpa [#allocation3], 0
    %10 = vsyncpa [#allocation6], 0
    %11 = vsyncpa [#allocation4], 0
    // Predicated region
    $region2: #{tpu_custom_call.1} parent=1 // pred_check
      _
    $region3: #{tpu_custom_call.1} parent=1 // pred_check_branch
      %13 = sbr.rel (0) target = $region5
    $region4: #{tpu_custom_call.1} parent=1 // pred_region
      %s15 = ssub.s32 256, 256
      %16 = vsyncadd [#allocation3], %s15
      %s17 = sshll.u32 [#allocation2], 4
      %s18 = int_to_ptr.vmem [resolvable:$true] %s17
      %23 = dma.hbm_to_vmem [thread:$0]  %s0, 256, %s18, [#allocation3], 64, 64, 4
    $region5: #{tpu_custom_call.1} parent=1 // pred_fallthru
      _
    // Predicated region
    $region6: #{tpu_custom_call.1} parent=1 // pred_check
      _
    $region7: #{tpu_custom_call.1} parent=1 // pred_check_branch
      %25 = sbr.rel (0) target = $region9
    $region8: #{tpu_custom_call.1} parent=1 // pred_region
      %s27 = ssub.s32 3456, 3456
      %28 = vsyncadd [#allocation6], %s27
      %s29 = sshll.u32 [#allocation5], 4
      %s30 = int_to_ptr.vmem [resolvable:$true] %s29
      %35 = dma.hbm_to_vmem [thread:$0]  %s1, 3456, %s30, [#allocation6], 64, 64, 4
    $region9: #{tpu_custom_call.1} parent=1 // pred_fallthru
      _
    // Predicated region
    $region10: #{tpu_custom_call.1} parent=1 // pred_check
      _
    $region11: #{tpu_custom_call.1} parent=1 // pred_check_branch
      %37 = sbr.rel (0) target = $region13
    $region12: #{tpu_custom_call.1} parent=1 // pred_region
      _
    $region13: #{tpu_custom_call.1} parent=1 // pred_fallthru
      _
    // Predicated region
    $region14: #{tpu_custom_call.1} parent=1 // pred_check
      _
    $region15: #{tpu_custom_call.1} parent=1 // pred_check_branch
      %39 = sbr.rel (0) target = $region17
    $region16: #{tpu_custom_call.1} parent=1 // pred_region
      _
    $region17: #{tpu_custom_call.1} parent=1 // pred_fallthru
      _
    // Predicated region
    $region18: #{tpu_custom_call.1} parent=1 // pred_check
      _
    $region19: #{tpu_custom_call.1} parent=1 // pred_check_branch
      %41 = sbr.rel (0) target = $region21
    $region20: #{tpu_custom_call.1} parent=1 // pred_region
      %42 = dma.done [#allocation3], 256
    $region21: #{tpu_custom_call.1} parent=1 // pred_fallthru
      _
    // Predicated region
    $region22: #{tpu_custom_call.1} parent=1 // pred_check
      _
    $region23: #{tpu_custom_call.1} parent=1 // pred_check_branch
      %44 = sbr.rel (0) target = $region25
    $region24: #{tpu_custom_call.1} parent=1 // pred_region
      %45 = dma.done [#allocation6], 3456
    $region25: #{tpu_custom_call.1} parent=1 // pred_fallthru
      _
    %v47 = vld [vmem:[#allocation2] sm:$0xf]
    %v48 = vld [vmem:[#allocation2 + $0x4] sm:$0xf]
    %v51 = vunpack.c.l.b16 %v47
    %v52 = vunpack.c.l.b16 %v48
    %v53 = vpack.c.b16 %v52, %v51
    %54 = vrot.lane.b32.xlu0 %v53, 8
    %v55 = vpop.permute.xlu0 %54
    %vm56 = vcmask 64512
    %v59 = vsel %vm56, 0, %v55
    %v60 = vsel %vm56, %v55, 0
    %v61 = vshrl.u32 %v59, 16
    %v63 = vrot.slane %v61, 7
    %v64 = vshll.u32 %v59, 16
    %v66 = vor.u32 %v63, %v64
    %v67 = vshrl.u32 %v60, 16
    %v69 = vrot.slane %v67, 7
    %v70 = vshll.u32 %v60, 16
    %v72 = vor.u32 %v69, %v70
    %vm77 = vcmask 1040384
    %vm78 = vsmask.f32 256
    %vm79 = vmand %vm77, %vm78
    %v80 = vsel %vm79, 0, %v66
    %v81 = vsel %vm79, 0, %v72
    %v82 = vsel %vm79, %v63, 0
    %v83 = vsel %vm79, %v69, 0
    %vm84 = vsmask.f32 7424
    %v86 = vshrl.u32 %v80, 16
    %v88 = vshll.u32 %v80, 16
    %v90 = vrot.slane %v88, 1
    %v91 = vor.u32 %v86, %v90
    %v93 = vshll.u32 %v82, 16
    %v95 = vrot.slane %v93, 1
    %v96 = vsel %vm84, %v91, %v95
    %v98 = vshrl.u32 %v81, 16
    %v100 = vshll.u32 %v81, 16
    %v102 = vrot.slane %v100, 1
    %v103 = vor.u32 %v98, %v102
    %v105 = vshll.u32 %v83, 16
    %v107 = vrot.slane %v105, 1
    %v108 = vsel %vm84, %v103, %v107
    %109 = vrot.lane.b32.xlu0 %v96, 16
    %v110 = vpop.permute.xlu0 %109
    %111 = vrot.lane.b32.xlu0 %v108, 16
    %v112 = vpop.permute.xlu0 %111
    %vm113 = vcmask 130048
    %v114 = vsel %vm113, %v110, %v112
    %vm119 = vcmask 1046528
    %v120 = vrot.slane %v80, 1
    %v121 = vrot.slane %v82, 1
    %v122 = vsel %vm119, %v120, %v121
    %v123 = vrot.slane %v81, 1
    %v124 = vrot.slane %v83, 1
    %v125 = vsel %vm119, %v123, %v124
    %126 = vrot.lane.b32.xlu0 %v122, 32
    %v127 = vpop.permute.xlu0 %126
    %128 = vrot.lane.b32.xlu0 %v125, 32
    %v129 = vpop.permute.xlu0 %128
    %vm130 = vcmask 261120
    %v131 = vsel %vm130, %v127, %v129
    %vm132 = vcmask 130048
    %v134 = vsel %vm132, %v81, %v110
    %vm136 = vcmask 261120
    %v139 = vsel %vm136, %v114, %v127
    %s141 = scalar_lea.vmem [#allocation2], 8
    %v142 = vld [vmem:[%s141] sm:$0xf]
    %v143 = vld [vmem:[%s141 + $0x4] sm:$0xf]
    %v146 = vunpack.c.l.b16 %v142
    %v147 = vunpack.c.l.b16 %v143
    %v148 = vpack.c.b16 %v147, %v146
    %149 = vrot.lane.b32.xlu0 %v148, 8
    %v150 = vpop.permute.xlu0 %149
    %v152 = vsel %vm56, 0, %v150
    %v153 = vsel %vm56, %v150, 0
    %v154 = vshrl.u32 %v152, 16
    %v156 = vrot.slane %v154, 7
    %v157 = vshll.u32 %v152, 16
    %v159 = vor.u32 %v156, %v157
    %v160 = vshrl.u32 %v153, 16
    %v162 = vrot.slane %v160, 7
    %v163 = vshll.u32 %v153, 16
    %v165 = vor.u32 %v162, %v163
    %v170 = vsel %vm79, 0, %v159
    %v171 = vsel %vm79, 0, %v165
    %v172 = vsel %vm79, %v156, 0
    %v173 = vsel %vm79, %v162, 0
    %v175 = vshrl.u32 %v170, 16
    %v177 = vshll.u32 %v170, 16
    %v179 = vrot.slane %v177, 1
    %v180 = vor.u32 %v175, %v179
    %v182 = vshll.u32 %v172, 16
    %v184 = vrot.slane %v182, 1
    %v185 = vsel %vm84, %v180, %v184
    %v187 = vshrl.u32 %v171, 16
    %v189 = vshll.u32 %v171, 16
    %v191 = vrot.slane %v189, 1
    %v192 = vor.u32 %v187, %v191
    %v194 = vshll.u32 %v173, 16
    %v196 = vrot.slane %v194, 1
    %v197 = vsel %vm84, %v192, %v196
    %198 = vrot.lane.b32.xlu0 %v185, 16
    %v199 = vpop.permute.xlu0 %198
    %200 = vrot.lane.b32.xlu0 %v197, 16
    %v201 = vpop.permute.xlu0 %200
    %v202 = vsel %vm113, %v199, %v201
    %v207 = vrot.slane %v170, 1
    %v208 = vrot.slane %v172, 1
    %v209 = vsel %vm119, %v207, %v208
    %v210 = vrot.slane %v171, 1
    %v211 = vrot.slane %v173, 1
    %v212 = vsel %vm119, %v210, %v211
    %213 = vrot.lane.b32.xlu0 %v209, 32
    %v214 = vpop.permute.xlu0 %213
    %215 = vrot.lane.b32.xlu0 %v212, 32
    %v216 = vpop.permute.xlu0 %215
    %v217 = vsel %vm130, %v214, %v216
    %v219 = vsel %vm132, %v171, %v199
    %v223 = vsel %vm136, %v202, %v214
    %v225 = vld [vmem:[#allocation5] sm:$0xf]
    %v226 = vld [vmem:[#allocation5 + $0x4] sm:$0xf]
    %v227 = vld [vmem:[#allocation5 + $0x8] sm:$0xf]
    %v228 = vld [vmem:[#allocation5 + $0xc] sm:$0xf]
    %v229 = vld [vmem:[#allocation5 + $0x10] sm:$0xf]
    %v230 = vld [vmem:[#allocation5 + $0x14] sm:$0xf]
    %v231 = vld [vmem:[#allocation5 + $0x18] sm:$0xf]
    %v232 = vld [vmem:[#allocation5 + $0x1c] sm:$0xf]
    %v233 = vld [vmem:[#allocation5 + $0x20] sm:$0xf]
    %v234 = vld [vmem:[#allocation5 + $0x24] sm:$0xf]
    %v235 = vld [vmem:[#allocation5 + $0x28] sm:$0xf]
    %v236 = vld [vmem:[#allocation5 + $0x2c] sm:$0xf]
    %v237 = vld [vmem:[#allocation5 + $0x30] sm:$0xf]
    %v238 = vld [vmem:[#allocation5 + $0x34] sm:$0xf]
    %v239 = vld [vmem:[#allocation5 + $0x38] sm:$0xf]
    %v240 = vld [vmem:[#allocation5 + $0x3c] sm:$0xf]
    %v241 = vld [vmem:[#allocation5 + $0x40] sm:$0xf]
    %v242 = vld [vmem:[#allocation5 + $0x44] sm:$0xf]
    %v243 = vld [vmem:[#allocation5 + $0x48] sm:$0xf]
    %v244 = vld [vmem:[#allocation5 + $0x4c] sm:$0xf]
    %v245 = vld [vmem:[#allocation5 + $0x50] sm:$0xf]
    %v246 = vld [vmem:[#allocation5 + $0x54] sm:$0xf]
    %v247 = vld [vmem:[#allocation5 + $0x58] sm:$0xf]
    %v248 = vld [vmem:[#allocation5 + $0x5c] sm:$0xf]
    %v249 = vld [vmem:[#allocation5 + $0x60] sm:$0xf]
    %v250 = vld [vmem:[#allocation5 + $0x64] sm:$0xf]
    %v251 = vld [vmem:[#allocation5 + $0x68] sm:$0xf]
    %v252 = vld [vmem:[#allocation5 + $0x6c] sm:$0xf]
    %v253 = vld [vmem:[#allocation5 + $0x70] sm:$0xf]
    %v254 = vld [vmem:[#allocation5 + $0x74] sm:$0xf]
    %v255 = vld [vmem:[#allocation5 + $0x78] sm:$0xf]
    %v256 = vld [vmem:[#allocation5 + $0x7c] sm:$0xf]
    %v257 = vld [vmem:[#allocation5 + $0x80] sm:$0xf]
    %v258 = vld [vmem:[#allocation5 + $0x84] sm:$0xf]
    %v259 = vld [vmem:[#allocation5 + $0x88] sm:$0xf]
    %v260 = vld [vmem:[#allocation5 + $0x8c] sm:$0xf]
    %v261 = vld [vmem:[#allocation5 + $0x90] sm:$0xf]
    %v262 = vld [vmem:[#allocation5 + $0x94] sm:$0xf]
    %v263 = vld [vmem:[#allocation5 + $0x98] sm:$0xf]
    %v264 = vld [vmem:[#allocation5 + $0x9c] sm:$0xf]
    %v265 = vld [vmem:[#allocation5 + $0xa0] sm:$0xf]
    %v266 = vld [vmem:[#allocation5 + $0xa4] sm:$0xf]
    %v267 = vld [vmem:[#allocation5 + $0xa8] sm:$0xf]
    %v268 = vld [vmem:[#allocation5 + $0xac] sm:$0xf]
    %v269 = vld [vmem:[#allocation5 + $0xb0] sm:$0xf]
    %v270 = vld [vmem:[#allocation5 + $0xb4] sm:$0xf]
    %v271 = vld [vmem:[#allocation5 + $0xb8] sm:$0xf]
    %v272 = vld [vmem:[#allocation5 + $0xbc] sm:$0xf]
    %v273 = vld [vmem:[#allocation5 + $0xc0] sm:$0xf]
    %v274 = vld [vmem:[#allocation5 + $0xc4] sm:$0xf]
    %v275 = vld [vmem:[#allocation5 + $0xc8] sm:$0xf]
    %v276 = vld [vmem:[#allocation5 + $0xcc] sm:$0xf]
    %v277 = vld [vmem:[#allocation5 + $0xd0] sm:$0xf]
    %v278 = vld [vmem:[#allocation5 + $0xd4] sm:$0xf]
    %v279 = vld [vmem:[%s2] sm:$0x1]
    %v281 = vlaneseq
    %v282 = vshrl.u32 %v281, 7
    %v283 = vsub.s32 0, %v282
    %v284 = vrot.slane %v279, %v283
    %v340 = vunpack.c.l.b16 %v225
    %v341 = vunpack.c.l.b16 %v226
    %v342 = vunpack.c.l.b16 %v227
    %v343 = vunpack.c.l.b16 %v228
    %v344 = vunpack.c.l.b16 %v229
    %v345 = vunpack.c.l.b16 %v230
    %v346 = vunpack.c.l.b16 %v231
    %v347 = vunpack.c.l.b16 %v232
    %v348 = vunpack.c.l.b16 %v233
    %v349 = vunpack.c.l.b16 %v234
    %v350 = vunpack.c.l.b16 %v235
    %v351 = vunpack.c.l.b16 %v236
    %v352 = vunpack.c.l.b16 %v237
    %v353 = vunpack.c.l.b16 %v238
    %v354 = vunpack.c.l.b16 %v239
    %v355 = vunpack.c.l.b16 %v240
    %v356 = vunpack.c.l.b16 %v241
    %v357 = vunpack.c.l.b16 %v242
    %v358 = vunpack.c.l.b16 %v243
    %v359 = vunpack.c.l.b16 %v244
    %v360 = vunpack.c.l.b16 %v245
    %v361 = vunpack.c.l.b16 %v246
    %v362 = vunpack.c.l.b16 %v247
    %v363 = vunpack.c.l.b16 %v248
    %v364 = vunpack.c.l.b16 %v249
    %v365 = vunpack.c.l.b16 %v250
    %v366 = vunpack.c.l.b16 %v251
    %v367 = vunpack.c.l.b16 %v252
    %v368 = vunpack.c.l.b16 %v253
    %v369 = vunpack.c.l.b16 %v254
    %v370 = vunpack.c.l.b16 %v255
    %v371 = vunpack.c.l.b16 %v256
    %v372 = vunpack.c.l.b16 %v257
    %v373 = vunpack.c.l.b16 %v258
    %v374 = vunpack.c.l.b16 %v259
    %v375 = vunpack.c.l.b16 %v260
    %v376 = vunpack.c.l.b16 %v261
    %v377 = vunpack.c.l.b16 %v262
    %v378 = vunpack.c.l.b16 %v263
    %v379 = vunpack.c.l.b16 %v264
    %v380 = vunpack.c.l.b16 %v265
    %v381 = vunpack.c.l.b16 %v266
    %v382 = vunpack.c.l.b16 %v267
    %v383 = vunpack.c.l.b16 %v268
    %v384 = vunpack.c.l.b16 %v269
    %v385 = vunpack.c.l.b16 %v270
    %v386 = vunpack.c.l.b16 %v271
    %v387 = vunpack.c.l.b16 %v272
    %v388 = vunpack.c.l.b16 %v273
    %v389 = vunpack.c.l.b16 %v274
    %v390 = vunpack.c.l.b16 %v275
    %v391 = vunpack.c.l.b16 %v276
    %v392 = vunpack.c.l.b16 %v277
    %v393 = vunpack.c.l.b16 %v278
    %v394 = vpack.c.b16 %v341, %v340
    %v395 = vpack.c.b16 %v343, %v342
    %v396 = vpack.c.b16 %v345, %v344
    %v397 = vpack.c.b16 %v347, %v346
    %v398 = vpack.c.b16 %v349, %v348
    %v399 = vpack.c.b16 %v351, %v350
    %v400 = vpack.c.b16 %v353, %v352
    %v401 = vpack.c.b16 %v355, %v354
    %v402 = vpack.c.b16 %v357, %v356
    %v403 = vpack.c.b16 %v359, %v358
    %v404 = vpack.c.b16 %v361, %v360
    %v405 = vpack.c.b16 %v363, %v362
    %v406 = vpack.c.b16 %v365, %v364
    %v407 = vpack.c.b16 %v367, %v366
    %v408 = vpack.c.b16 %v369, %v368
    %v409 = vpack.c.b16 %v371, %v370
    %v410 = vpack.c.b16 %v373, %v372
    %v411 = vpack.c.b16 %v375, %v374
    %v412 = vpack.c.b16 %v377, %v376
    %v413 = vpack.c.b16 %v379, %v378
    %v414 = vpack.c.b16 %v381, %v380
    %v415 = vpack.c.b16 %v383, %v382
    %v416 = vpack.c.b16 %v385, %v384
    %v417 = vpack.c.b16 %v387, %v386
    %v418 = vpack.c.b16 %v389, %v388
    %v419 = vpack.c.b16 %v391, %v390
    %v420 = vpack.c.b16 %v393, %v392
    %vm448 = vcmask 392192
    %v450 = vsel %vm448, %v131, 0
    %v453 = vsel %vm448, %v217, 0
    %455 = vmatprep.subr.bf16.mxu0 0
    %456 = vmatpush1.bf16.msra.mxu0 %v394
    %457 = vmatprep.subr.bf16.mxu0 0
    %458 = vmatpush1.bf16.msra.mxu0 %v395
    %459 = vmatprep.subr.bf16.mxu0 0
    %460 = vmatpush1.bf16.msra.mxu0 %v396
    %461 = vmatprep.subr.bf16.mxu0 0
    %462 = vmatpush1.bf16.msra.mxu0 %v397
    %463 = vmatprep.subr.bf16.mxu0 0
    %464 = vmatpush1.bf16.msra.mxu0 %v398
    %465 = vmatprep.subr.bf16.mxu0 0
    %466 = vmatpush1.bf16.msra.mxu0 %v399
    %467 = vmatprep.subr.bf16.mxu0 0
    %468 = vmatpush1.bf16.msra.mxu0 %v400
    %469 = vmatprep.subr.bf16.mxu0 0
    %470 = vmatpush1.bf16.msra.mxu0 %v401
    %471 = vmatprep.subr.bf16.mxu0 0
    %472 = vmatpush1.bf16.msra.mxu0 %v402
    %473 = vmatprep.subr.bf16.mxu0 0
    %474 = vmatpush1.bf16.msra.mxu0 %v403
    %475 = vmatprep.subr.bf16.mxu0 0
    %476 = vmatpush1.bf16.msra.mxu0 %v404
    %477 = vmatprep.subr.bf16.mxu0 0
    %478 = vmatpush1.bf16.msra.mxu0 %v405
    %479 = vmatprep.subr.bf16.mxu0 0
    %480 = vmatpush1.bf16.msra.mxu0 %v406
    %481 = vmatprep.subr.bf16.mxu0 0
    %482 = vmatpush1.bf16.msra.mxu0 %v407
    %483 = vmatprep.subr.bf16.mxu0 0
    %484 = vmatpush1.bf16.msra.mxu0 %v408
    %485 = vmatprep.subr.bf16.mxu0 0
    %486 = vmatpush1.bf16.msra.mxu0 %v409
    %487 = vmatprep.mubr.bf16.mxu0 %v134
    %488 = vmatmul.mubr.bf16.gmra.mrb[0].mxu0 %v80
    %v489 = vpop.f32.mrb[0].mxu0
    %v490 = vadd.f32 %v284, %v489
    %v491 = vpop.f32.mrb[0].mxu0
    %v492 = vpop.f32.mrb[0].mxu0
    %v493 = vadd.f32 %v284, %v492
    %v494 = vpop.f32.mrb[0].mxu0
    %495 = vmatprep.mubr.bf16.mxu0 %v219
    %496 = vmatmul.mubr.bf16.gmra.mrb[0].mxu0 %v170
    %v497 = vpop.f32.mrb[0].mxu0
    %v498 = vadd.f32 %v284, %v497
    %v499 = vpop.f32.mrb[0].mxu0
    %v500 = vpop.f32.mrb[0].mxu0
    %v501 = vadd.f32 %v284, %v500
    %v502 = vpop.f32.mrb[0].mxu0
    %503 = vdwg.mxu0
    %504 = vmatprep.subr.bf16.mxu0 0
    %505 = vmatpush1.bf16.msra.mxu0 %v410
    %506 = vmatprep.subr.bf16.mxu0 0
    %507 = vmatpush1.bf16.msra.mxu0 %v411
    %508 = vmatprep.subr.bf16.mxu0 0
    %509 = vmatpush1.bf16.msra.mxu0 %v412
    %510 = vmatprep.subr.bf16.mxu0 0
    %511 = vmatpush1.bf16.msra.mxu0 %v413
    %512 = vmatprep.subr.bf16.mxu0 0
    %513 = vmatpush1.bf16.msra.mxu0 %v414
    %514 = vmatprep.subr.bf16.mxu0 0
    %515 = vmatpush1.bf16.msra.mxu0 %v415
    %516 = vmatprep.subr.bf16.mxu0 0
    %517 = vmatpush1.bf16.msra.mxu0 %v416
    %518 = vmatprep.subr.bf16.mxu0 0
    %519 = vmatpush1.bf16.msra.mxu0 %v417
    %520 = vmatprep.subr.bf16.mxu0 0
    %521 = vmatpush1.bf16.msra.mxu0 %v418
    %522 = vmatprep.subr.bf16.mxu0 0
    %523 = vmatpush1.bf16.msra.mxu0 %v419
    %524 = vmatprep.subr.bf16.mxu0 0
    %525 = vmatpush1.bf16.msra.mxu0 %v420
    %526 = vmatprep.subr.bf16.mxu0 0
    %527 = vmatpush1.bf16.msra.mxu0 0
    %528 = vmatprep.subr.bf16.mxu0 0
    %529 = vmatpush1.bf16.msra.mxu0 0
    %530 = vmatprep.subr.bf16.mxu0 0
    %531 = vmatpush1.bf16.msra.mxu0 0
    %532 = vmatprep.subr.bf16.mxu0 0
    %533 = vmatpush1.bf16.msra.mxu0 0
    %534 = vmatprep.subr.bf16.mxu0 0
    %535 = vmatpush1.bf16.msra.mxu0 0
    %536 = vmatprep.mubr.bf16.mxu0 %v450
    %537 = vmatmul.mubr.bf16.gmra.mrb[0].mxu0 %v139
    %v538 = vpop.f32.mrb[0].mxu0
    %v539 = vadd.f32 %v490, %v538
    %v540 = vpop.f32.mrb[0].mxu0
    %v541 = vpop.f32.mrb[0].mxu0
    %v542 = vadd.f32 %v493, %v541
    %v543 = vpop.f32.mrb[0].mxu0
    %544 = vmatprep.mubr.bf16.mxu0 %v453
    %545 = vmatmul.mubr.bf16.gmra.mrb[0].mxu0 %v223
    %v546 = vpop.f32.mrb[0].mxu0
    %v547 = vadd.f32 %v498, %v546
    %v548 = vpop.f32.mrb[0].mxu0
    %v549 = vpop.f32.mrb[0].mxu0
    %v550 = vadd.f32 %v501, %v549
    %v551 = vpop.f32.mrb[0].mxu0
    %552 = vdwg.mxu0
    %vm553 = vcmp.gt.f32.partialorder %v539, 0.0
    %vm554 = vcmp.gt.f32.partialorder %v542, 0.0
    %vm555 = vcmp.gt.f32.partialorder %v547, 0.0
    %vm556 = vcmp.gt.f32.partialorder %v550, 0.0
    %v557 = vld [vmem:[%s3] sm:$0x1]
    %v559 = vlaneseq
    %v560 = vshrl.u32 %v559, 7
    %v561 = vsub.s32 0, %v560
    %v562 = vrot.slane %v557, %v561
    %v564 = vmul.f32 %v562, %v539
    %v565 = vmul.f32 %v562, %v542
    %v566 = vmul.f32 %v562, %v547
    %v567 = vmul.f32 %v562, %v550
    %v568 = vsel %vm553, %v539, %v564
    %v569 = vsel %vm554, %v542, %v565
    %v570 = vsel %vm555, %v547, %v566
    %v571 = vsel %vm556, %v550, %v567
    %574 = vrot.lane.b32.xlu0 %v568, 8
    %v575 = vpop.permute.xlu0 %574
    %576 = vrot.lane.b32.xlu0 %v569, 8
    %v577 = vpop.permute.xlu0 %576
    %v580 = vsel %vm56, -inf, %v575
    %v581 = vsel %vm56, -inf, %v577
    %v582 = vsel %vm56, %v575, -inf
    %v583 = vsel %vm56, %v577, -inf
    %588 = vrot.lane.b32.xlu0 %v580, 120
    %v589 = vpop.permute.xlu0 %588
    %590 = vrot.lane.b32.xlu0 %v582, 120
    %v591 = vpop.permute.xlu0 %590
    %592 = vrot.lane.b32.xlu0 %v581, 120
    %v593 = vpop.permute.xlu0 %592
    %594 = vrot.lane.b32.xlu0 %v583, 120
    %v595 = vpop.permute.xlu0 %594
    %vm596 = vcmask 982016
    %v597 = vsel %vm596, %v589, %v591
    %v598 = vsel %vm596, %v593, %v595
    %v601 = vmax.f32 %v580, %v597
    %v602 = vmax.f32 %v581, %v598
    %603 = vrot.lane.b32.xlu0 %v580, 112
    %v604 = vpop.permute.xlu0 %603
    %605 = vrot.lane.b32.xlu0 %v582, 112
    %v606 = vpop.permute.xlu0 %605
    %607 = vrot.lane.b32.xlu0 %v581, 112
    %v608 = vpop.permute.xlu0 %607
    %609 = vrot.lane.b32.xlu0 %v583, 112
    %v610 = vpop.permute.xlu0 %609
    %vm611 = vcmask 916480
    %v612 = vsel %vm611, %v604, %v606
    %v613 = vsel %vm611, %v608, %v610
    %v616 = vmax.f32 %v601, %v612
    %v617 = vmax.f32 %v602, %v613
    %620 = vrot.lane.b32.xlu0 %v616, 120
    %v621 = vpop.permute.xlu0 %620
    %622 = vrot.lane.b32.xlu0 %v617, 120
    %v623 = vpop.permute.xlu0 %622
    %626 = vrot.lane.b32.xlu0 %v616, 112
    %v627 = vpop.permute.xlu0 %626
    %628 = vrot.lane.b32.xlu0 %v617, 112
    %v629 = vpop.permute.xlu0 %628
    %632 = vrot.lane.b32.xlu0 %v616, 104
    %v633 = vpop.permute.xlu0 %632
    %634 = vrot.lane.b32.xlu0 %v617, 104
    %v635 = vpop.permute.xlu0 %634
    %638 = vrot.lane.b32.xlu0 %v616, 96
    %v639 = vpop.permute.xlu0 %638
    %640 = vrot.lane.b32.xlu0 %v617, 96
    %v641 = vpop.permute.xlu0 %640
    %644 = vrot.lane.b32.xlu0 %v616, 88
    %v645 = vpop.permute.xlu0 %644
    %646 = vrot.lane.b32.xlu0 %v617, 88
    %v647 = vpop.permute.xlu0 %646
    %650 = vrot.lane.b32.xlu0 %v616, 80
    %v651 = vpop.permute.xlu0 %650
    %652 = vrot.lane.b32.xlu0 %v617, 80
    %v653 = vpop.permute.xlu0 %652
    %656 = vrot.lane.b32.xlu0 %v616, 72
    %v657 = vpop.permute.xlu0 %656
    %658 = vrot.lane.b32.xlu0 %v617, 72
    %v659 = vpop.permute.xlu0 %658
    %v662 = vsel %vm56, %v616, %v621
    %v663 = vsel %vm56, %v617, %v623
    %v664 = vsel %vm132, %v662, %v627
    %v665 = vsel %vm132, %v663, %v629
    %vm666 = vcmask 195584
    %v667 = vsel %vm666, %v664, %v633
    %v668 = vsel %vm666, %v665, %v635
    %v669 = vsel %vm136, %v667, %v639
    %v670 = vsel %vm136, %v668, %v641
    %vm671 = vcmask 326656
    %v672 = vsel %vm671, %v669, %v645
    %v673 = vsel %vm671, %v670, %v647
    %v674 = vsel %vm448, %v672, %v651
    %v675 = vsel %vm448, %v673, %v653
    %vm676 = vcmask 457728
    %v677 = vsel %vm676, %v674, %v657
    %v678 = vsel %vm676, %v675, %v659
    %vm681 = vcmask 1040384
    %v682 = vrot.slane %v677, 7
    %v683 = vrot.slane %v678, 7
    %v684 = vsel %vm681, %v682, %v683
    %v688 = vsel %vm681, -inf, %v682
    %v689 = vsel %vm681, %v683, -inf
    %vm692 = vcmask 1046528
    %v693 = vrot.slane %v688, 1
    %v694 = vrot.slane %v684, 1
    %v695 = vsel %vm692, %v693, %v694
    %v696 = vrot.slane %v689, 1
    %v697 = vsel %vm692, %v694, %v696
    %v700 = vmax.f32 %v688, %v695
    %v701 = vmax.f32 %v684, %v697
    %vm702 = vcmask 1045504
    %v703 = vrot.slane %v688, 2
    %v704 = vrot.slane %v684, 2
    %v705 = vsel %vm702, %v703, %v704
    %v706 = vrot.slane %v689, 2
    %v707 = vsel %vm702, %v704, %v706
    %v710 = vmax.f32 %v700, %v705
    %v711 = vmax.f32 %v701, %v707
    %v713 = vrot.slane %v710, 1
    %v715 = vrot.slane %v710, 2
    %v717 = vrot.slane %v710, 3
    %v720 = vrot.slane %v711, 4
    %v722 = vrot.slane %v711, 5
    %v724 = vrot.slane %v711, 6
    %v726 = vrot.slane %v711, 7
    %v728 = vsel %vm681, %v710, %v713
    %vm729 = vcmask 1041408
    %v730 = vsel %vm729, %v728, %v715
    %vm731 = vcmask 1042432
    %v732 = vsel %vm731, %v730, %v717
    %vm733 = vcmask 1043456
    %v734 = vsel %vm733, %v732, %v720
    %vm735 = vcmask 1044480
    %v736 = vsel %vm735, %v734, %v722
    %v737 = vsel %vm702, %v736, %v724
    %v738 = vsel %vm692, %v737, %v726
    %vm739 = vcmask 523264
    %740 = vst.msk [vmem:[#allocation7] sm:$0xff] %vm739, %v738
    %743 = vrot.lane.b32.xlu0 %v570, 8
    %v744 = vpop.permute.xlu0 %743
    %745 = vrot.lane.b32.xlu0 %v571, 8
    %v746 = vpop.permute.xlu0 %745
    %v749 = vsel %vm56, -inf, %v744
    %v750 = vsel %vm56, -inf, %v746
    %v751 = vsel %vm56, %v744, -inf
    %v752 = vsel %vm56, %v746, -inf
    %757 = vrot.lane.b32.xlu0 %v749, 120
    %v758 = vpop.permute.xlu0 %757
    %759 = vrot.lane.b32.xlu0 %v751, 120
    %v760 = vpop.permute.xlu0 %759
    %761 = vrot.lane.b32.xlu0 %v750, 120
    %v762 = vpop.permute.xlu0 %761
    %763 = vrot.lane.b32.xlu0 %v752, 120
    %v764 = vpop.permute.xlu0 %763
    %v765 = vsel %vm596, %v758, %v760
    %v766 = vsel %vm596, %v762, %v764
    %v769 = vmax.f32 %v749, %v765
    %v770 = vmax.f32 %v750, %v766
    %771 = vrot.lane.b32.xlu0 %v749, 112
    %v772 = vpop.permute.xlu0 %771
    %773 = vrot.lane.b32.xlu0 %v751, 112
    %v774 = vpop.permute.xlu0 %773
    %775 = vrot.lane.b32.xlu0 %v750, 112
    %v776 = vpop.permute.xlu0 %775
    %777 = vrot.lane.b32.xlu0 %v752, 112
    %v778 = vpop.permute.xlu0 %777
    %v779 = vsel %vm611, %v772, %v774
    %v780 = vsel %vm611, %v776, %v778
    %v783 = vmax.f32 %v769, %v779
    %v784 = vmax.f32 %v770, %v780
    %787 = vrot.lane.b32.xlu0 %v783, 120
    %v788 = vpop.permute.xlu0 %787
    %789 = vrot.lane.b32.xlu0 %v784, 120
    %v790 = vpop.permute.xlu0 %789
    %793 = vrot.lane.b32.xlu0 %v783, 112
    %v794 = vpop.permute.xlu0 %793
    %795 = vrot.lane.b32.xlu0 %v784, 112
    %v796 = vpop.permute.xlu0 %795
    %799 = vrot.lane.b32.xlu0 %v783, 104
    %v800 = vpop.permute.xlu0 %799
    %801 = vrot.lane.b32.xlu0 %v784, 104
    %v802 = vpop.permute.xlu0 %801
    %805 = vrot.lane.b32.xlu0 %v783, 96
    %v806 = vpop.permute.xlu0 %805
    %807 = vrot.lane.b32.xlu0 %v784, 96
    %v808 = vpop.permute.xlu0 %807
    %811 = vrot.lane.b32.xlu0 %v783, 88
    %v812 = vpop.permute.xlu0 %811
    %813 = vrot.lane.b32.xlu0 %v784, 88
    %v814 = vpop.permute.xlu0 %813
    %817 = vrot.lane.b32.xlu0 %v783, 80
    %v818 = vpop.permute.xlu0 %817
    %819 = vrot.lane.b32.xlu0 %v784, 80
    %v820 = vpop.permute.xlu0 %819
    %823 = vrot.lane.b32.xlu0 %v783, 72
    %v824 = vpop.permute.xlu0 %823
    %825 = vrot.lane.b32.xlu0 %v784, 72
    %v826 = vpop.permute.xlu0 %825
    %v829 = vsel %vm56, %v783, %v788
    %v830 = vsel %vm56, %v784, %v790
    %v831 = vsel %vm132, %v829, %v794
    %v832 = vsel %vm132, %v830, %v796
    %v833 = vsel %vm666, %v831, %v800
    %v834 = vsel %vm666, %v832, %v802
    %v835 = vsel %vm136, %v833, %v806
    %v836 = vsel %vm136, %v834, %v808
    %v837 = vsel %vm671, %v835, %v812
    %v838 = vsel %vm671, %v836, %v814
    %v839 = vsel %vm448, %v837, %v818
    %v840 = vsel %vm448, %v838, %v820
    %v841 = vsel %vm676, %v839, %v824
    %v842 = vsel %vm676, %v840, %v826
    %v845 = vrot.slane %v841, 7
    %v846 = vrot.slane %v842, 7
    %v847 = vsel %vm681, %v845, %v846
    %v851 = vsel %vm681, -inf, %v845
    %v852 = vsel %vm681, %v846, -inf
    %v855 = vrot.slane %v851, 1
    %v856 = vrot.slane %v847, 1
    %v857 = vsel %vm692, %v855, %v856
    %v858 = vrot.slane %v852, 1
    %v859 = vsel %vm692, %v856, %v858
    %v862 = vmax.f32 %v851, %v857
    %v863 = vmax.f32 %v847, %v859
    %v864 = vrot.slane %v851, 2
    %v865 = vrot.slane %v847, 2
    %v866 = vsel %vm702, %v864, %v865
    %v867 = vrot.slane %v852, 2
    %v868 = vsel %vm702, %v865, %v867
    %v871 = vmax.f32 %v862, %v866
    %v872 = vmax.f32 %v863, %v868
    %v874 = vrot.slane %v871, 1
    %v876 = vrot.slane %v871, 2
    %v878 = vrot.slane %v871, 3
    %v881 = vrot.slane %v872, 4
    %v883 = vrot.slane %v872, 5
    %v885 = vrot.slane %v872, 6
    %v887 = vrot.slane %v872, 7
    %v889 = vsel %vm681, %v871, %v874
    %v890 = vsel %vm729, %v889, %v876
    %v891 = vsel %vm731, %v890, %v878
    %v892 = vsel %vm733, %v891, %v881
    %v893 = vsel %vm735, %v892, %v883
    %v894 = vsel %vm702, %v893, %v885
    %v895 = vsel %vm692, %v894, %v887
    %s896 = scalar_lea.vmem [#allocation7], 8
    %897 = vst.msk [vmem:[%s896] sm:$0xff] %vm739, %v895
    // Predicated region
    $region26: #{tpu_custom_call.1} parent=1 // pred_check
      _
    $region27: #{tpu_custom_call.1} parent=1 // pred_check_branch
      %899 = sbr.rel (0) target = $region29
    $region28: #{tpu_custom_call.1} parent=1 // pred_region
      %s901 = ssub.s32 256, 256
      %902 = vsyncadd [#allocation4], %s901
      %s903 = sshll.u32 [#allocation7], 4
      %s904 = int_to_ptr.vmem [resolvable:$true] %s903
      %909 = dma.vmem_to_hbm [thread:$0]  %s904, 256, %s4, [#allocation4], 128, 128, 8
    $region29: #{tpu_custom_call.1} parent=1 // pred_fallthru
      _
    // Predicated region
    $region30: #{tpu_custom_call.1} parent=1 // pred_check
      _
    $region31: #{tpu_custom_call.1} parent=1 // pred_check_branch
      %911 = sbr.rel (0) target = $region33
    $region32: #{tpu_custom_call.1} parent=1 // pred_region
      %912 = dma.done [#allocation4], 256
    $region33: #{tpu_custom_call.1} parent=1 // pred_fallthru
      _
    %913 = vsyncpa [#allocation3], 1
    %914 = vsyncpa [#allocation6], 1
    %915 = vsyncpa [#allocation4], 1

</llo_original>
